<compile_context>
chip_gen: v5e
topology: v5e:2x2
jax: 0.10.0
libtpu: 0.0.40
codegen_flags: <defaults>
</compile_context>

<pallas_src>
import functools

import jax
import jax.numpy as jnp
from jax.experimental import pallas as pl
from jax.experimental.pallas import tpu as pltpu


def _fused_decoder_kernel(*refs, n_layers, matmul_dtype):
    """Fused decoder: h = x; repeat h = act(h @ W_i + b_i); final act = tanh.

    refs layout: (x_ref, w1, b1, w2, b2, ..., wn, bn, o_ref)
      x_ref : (TB, in_f)      w_i : (in_f_i, out_f_i)      b_i : (1, out_f_i)
      o_ref : (TB, im_size)
    """
    x_ref = refs[0]
    o_ref = refs[-1]

    h = x_ref[...]
    for i in range(n_layers):
        w = refs[1 + 2 * i][...]
        b = refs[2 + 2 * i][...]
        if matmul_dtype is not None:
            h = h.astype(matmul_dtype)
            w = w.astype(matmul_dtype)
        y = jnp.dot(h, w, preferred_element_type=jnp.float32)
        y = y + b  # (1, out_f) broadcasts over batch rows; f32 on the VPU
        if i == n_layers - 1:
            h = jnp.tanh(y)            # EUP transcendental, f32
        else:
            h = jnp.maximum(y, 0.0)    # VPU, f32
    o_ref[...] = h.astype(o_ref.dtype)


def _pick_batch_tile(batch, batch_tile):
    """Largest tile <= batch_tile that is either the full batch or a multiple of 8."""
    if batch <= batch_tile:
        return batch                      # full-extent block is always legal
    tb = (batch_tile // 8) * 8
    return max(tb, 8)


def decoder_forward(params, x, *, batch_tile=256, matmul_dtype=None):
    """Single fused Pallas call for the whole decoder.

    params: list of (w_t, b2d) with w_t:(in_f, out_f) f32 and b2d:(1, out_f) f32
            (already pre-transposed / pre-reshaped at init time).
    x     : (B, dec_sizes[0]) f32.
    """
    batch, in_f = x.shape
    n_layers = len(params)
    out_f = params[-1][0].shape[1]

    tb = _pick_batch_tile(batch, batch_tile)
    grid = (pl.cdiv(batch, tb),)

    # ---- specs: activations tiled over batch, weights/biases pinned resident.
    inputs = [x]
    in_specs = [pl.BlockSpec((tb, in_f), lambda i: (i, 0))]
    for (w_t, b2d) in params:
        inputs.append(w_t)
        in_specs.append(pl.BlockSpec(w_t.shape, lambda i: (0, 0)))
        inputs.append(b2d)
        in_specs.append(pl.BlockSpec(b2d.shape, lambda i: (0, 0)))
    out_specs = pl.BlockSpec((tb, out_f), lambda i: (i, 0))

    # ---- VMEM budget: resident weights + double-buffered activation tiles,
    # with headroom, clamped to v7x's 64 MiB physical VMEM.
    f32_bytes = 4
    weight_bytes = sum(w.size + b.size for w, b in params) * f32_bytes
    widest = max([in_f, out_f] + [w.shape[1] for w, _ in params])
    act_bytes = 2 * (tb * in_f + tb * out_f) * f32_bytes + 2 * tb * widest * f32_bytes
    vmem_limit = min(64 * 1024 * 1024,
                     max(2 * (weight_bytes + act_bytes), 32 * 1024 * 1024))

    # ---- advisory cost estimate for XLA scheduling around the custom call.
    flops = 2 * batch * sum(w.shape[0] * w.shape[1] for w, _ in params)
    transcendentals = batch * out_f  # tanh on the final layer
    bytes_accessed = f32_bytes * (x.size + batch * out_f) + weight_bytes
    cost = pl.CostEstimate(flops=flops,
                           transcendentals=transcendentals,
                           bytes_accessed=bytes_accessed)

    kernel = functools.partial(_fused_decoder_kernel,
                               n_layers=n_layers,
                               matmul_dtype=matmul_dtype)
    return pl.pallas_call(
        kernel,
        out_shape=jax.ShapeDtypeStruct((batch, out_f), x.dtype),
        grid=grid,
        in_specs=in_specs,
        out_specs=out_specs,
        compiler_params=pltpu.CompilerParams(
            dimension_semantics=("parallel",),
            vmem_limit_bytes=vmem_limit,
        ),
        cost_estimate=cost,
    )(*inputs)


def init_decoder_params(key, dec_sizes, im_size):
    """Deterministic init matching Decoder.weights_init():
       weights ~ Normal(0, 0.02), biases = 0.

    Weights are stored pre-transposed as (in_f, out_f) and biases as (1, out_f)
    so the forward pass does no per-call transpose/reshape (hoisted once here).
    """
    params = []
    layer_dims = list(zip(dec_sizes, dec_sizes[1:])) + [(dec_sizes[-1], im_size)]
    for (in_f, out_f) in layer_dims:
        key, wk = jax.random.split(key)
        w_t = 0.02 * jax.random.normal(wk, (in_f, out_f), dtype=jnp.float32)
        b2d = jnp.zeros((1, out_f), dtype=jnp.float32)
        params.append((w_t, b2d))
    return params


def decoder_reference(params, x):
    """Pure-JAX reference for validation."""
    n_layers = len(params)
    for idx, (w_t, b2d) in enumerate(params):
        y = x @ w_t + b2d
        x = jnp.tanh(y) if idx == n_layers - 1 else jnp.maximum(y, 0.0)
    return x


if __name__ == "__main__":
    # Small shapes consistent with the module:
    #   dec_sizes = [32, 64, 128], im_size = 256, batch = 8
    dec_sizes = [32, 64, 128]
    im_size = 256
    batch = 8

    key = jax.random.PRNGKey(0)
    key, xk = jax.random.split(key)
    x = jax.random.normal(xk, (batch, dec_sizes[0]), dtype=jnp.float32)

    params = init_decoder_params(key, dec_sizes, im_size)

    out = decoder_forward(params, x)
    out = jax.block_until_ready(out)

    ref = decoder_reference(params, x)
    assert out.shape == (batch, im_size), out.shape
    assert jnp.allclose(out, ref, atol=1e-5, rtol=1e-5), "mismatch vs reference"

    print("KERNEL_OK")
</pallas_src>

<mosaic_0001>
module attributes {stable_mosaic.version = 11 : i64} {
  func.func @_fused_decoder_kernel(%arg0: i32, %arg1: memref<8x32xf32, #tpu.memory_space<vmem>>, %arg2: memref<32x64xf32, #tpu.memory_space<vmem>>, %arg3: memref<1x64xf32, #tpu.memory_space<vmem>>, %arg4: memref<64x128xf32, #tpu.memory_space<vmem>>, %arg5: memref<1x128xf32, #tpu.memory_space<vmem>>, %arg6: memref<128x256xf32, #tpu.memory_space<vmem>>, %arg7: memref<1x256xf32, #tpu.memory_space<vmem>>, %arg8: memref<8x256xf32, #tpu.memory_space<vmem>>) attributes {dimension_semantics = [#tpu.dimension_semantics<parallel>], iteration_bounds = array<i64: 1>, scalar_prefetch = 0 : i64, scratch_operands = 0 : i64, tpu.core_type = #tpu.core_type<tc>, window_params = [{transform_indices = @transform_0, window_bounds = array<i64: 8, 32>}, {pipeline_mode = #tpu.pipeline_mode<synchronous>, transform_indices = @transform_1, window_bounds = array<i64: 32, 64>}, {pipeline_mode = #tpu.pipeline_mode<synchronous>, transform_indices = @transform_2, window_bounds = array<i64: 1, 64>}, {pipeline_mode = #tpu.pipeline_mode<synchronous>, transform_indices = @transform_3, window_bounds = array<i64: 64, 128>}, {pipeline_mode = #tpu.pipeline_mode<synchronous>, transform_indices = @transform_4, window_bounds = array<i64: 1, 128>}, {pipeline_mode = #tpu.pipeline_mode<synchronous>, transform_indices = @transform_5, window_bounds = array<i64: 128, 256>}, {pipeline_mode = #tpu.pipeline_mode<synchronous>, transform_indices = @transform_6, window_bounds = array<i64: 1, 256>}, {transform_indices = @transform_7, window_bounds = array<i64: 8, 256>}]} {
    %c0 = arith.constant 0 : index
    %c0_0 = arith.constant 0 : index
    %0 = vector.load %arg1[%c0, %c0_0] : memref<8x32xf32, #tpu.memory_space<vmem>>, vector<8x32xf32>
    %c0_1 = arith.constant 0 : index
    %c0_2 = arith.constant 0 : index
    %1 = vector.load %arg2[%c0_1, %c0_2] : memref<32x64xf32, #tpu.memory_space<vmem>>, vector<32x64xf32>
    %c0_3 = arith.constant 0 : index
    %c0_4 = arith.constant 0 : index
    %2 = vector.load %arg3[%c0_3, %c0_4] : memref<1x64xf32, #tpu.memory_space<vmem>>, vector<1x64xf32>
    %cst = arith.constant dense<0.000000e+00> : vector<8x64xf32>
    %3 = tpu.matmul %0, %1, %cst {dimension_numbers = #tpu.dot_dimension_numbers<[1], [0], [0], [1], [0, 0, 1, 1], [], []>} : vector<8x32xf32>, vector<32x64xf32>, vector<8x64xf32> -> vector<8x64xf32>
    %4 = vector.broadcast %2 : vector<1x64xf32> to vector<8x64xf32>
    %5 = arith.addf %3, %4 : vector<8x64xf32>
    %cst_5 = arith.constant 0.000000e+00 : f32
    %6 = vector.broadcast %cst_5 : f32 to vector<8x64xf32>
    %7 = arith.maximumf %5, %6 : vector<8x64xf32>
    %c0_6 = arith.constant 0 : index
    %c0_7 = arith.constant 0 : index
    %8 = vector.load %arg4[%c0_6, %c0_7] : memref<64x128xf32, #tpu.memory_space<vmem>>, vector<64x128xf32>
    %c0_8 = arith.constant 0 : index
    %c0_9 = arith.constant 0 : index
    %9 = vector.load %arg5[%c0_8, %c0_9] : memref<1x128xf32, #tpu.memory_space<vmem>>, vector<1x128xf32>
    %cst_10 = arith.constant dense<0.000000e+00> : vector<8x128xf32>
    %10 = tpu.matmul %7, %8, %cst_10 {dimension_numbers = #tpu.dot_dimension_numbers<[1], [0], [0], [1], [0, 0, 1, 1], [], []>} : vector<8x64xf32>, vector<64x128xf32>, vector<8x128xf32> -> vector<8x128xf32>
    %11 = vector.broadcast %9 : vector<1x128xf32> to vector<8x128xf32>
    %12 = arith.addf %10, %11 : vector<8x128xf32>
    %cst_11 = arith.constant 0.000000e+00 : f32
    %13 = vector.broadcast %cst_11 : f32 to vector<8x128xf32>
    %14 = arith.maximumf %12, %13 : vector<8x128xf32>
    %c0_12 = arith.constant 0 : index
    %c0_13 = arith.constant 0 : index
    %15 = vector.load %arg6[%c0_12, %c0_13] : memref<128x256xf32, #tpu.memory_space<vmem>>, vector<128x256xf32>
    %c0_14 = arith.constant 0 : index
    %c0_15 = arith.constant 0 : index
    %16 = vector.load %arg7[%c0_14, %c0_15] : memref<1x256xf32, #tpu.memory_space<vmem>>, vector<1x256xf32>
    %cst_16 = arith.constant dense<0.000000e+00> : vector<8x256xf32>
    %17 = tpu.matmul %14, %15, %cst_16 {dimension_numbers = #tpu.dot_dimension_numbers<[1], [0], [0], [1], [0, 0, 1, 1], [], []>} : vector<8x128xf32>, vector<128x256xf32>, vector<8x256xf32> -> vector<8x256xf32>
    %18 = vector.broadcast %16 : vector<1x256xf32> to vector<8x256xf32>
    %19 = arith.addf %17, %18 : vector<8x256xf32>
    %20 = math.tanh %19 : vector<8x256xf32>
    %c0_17 = arith.constant 0 : index
    %c0_18 = arith.constant 0 : index
    %21 = vector.load %arg8[%c0_17, %c0_18] : memref<8x256xf32, #tpu.memory_space<vmem>>, vector<8x256xf32>
    tpu.vector_store %arg8[%c0_17, %c0_18], %20 {strides = array<i32>} : memref<8x256xf32, #tpu.memory_space<vmem>>, vector<8x256xf32>,
    return
  }
  func.func @transform_0(%arg0: i32) -> (i32, i32) {
    %c0_i32 = arith.constant 0 : i32
    %c0_i32_0 = arith.constant 0 : i32
    return %arg0, %c0_i32 : i32, i32
  }
  func.func @transform_1(%arg0: i32) -> (i32, i32) {
    %c0_i32 = arith.constant 0 : i32
    %c0_i32_0 = arith.constant 0 : i32
    %c0_i32_1 = arith.constant 0 : i32
    return %c0_i32, %c0_i32_0 : i32, i32
  }
  func.func @transform_2(%arg0: i32) -> (i32, i32) {
    %c0_i32 = arith.constant 0 : i32
    %c0_i32_0 = arith.constant 0 : i32
    %c0_i32_1 = arith.constant 0 : i32
    return %c0_i32, %c0_i32_0 : i32, i32
  }
  func.func @transform_3(%arg0: i32) -> (i32, i32) {
    %c0_i32 = arith.constant 0 : i32
    %c0_i32_0 = arith.constant 0 : i32
    %c0_i32_1 = arith.constant 0 : i32
    return %c0_i32, %c0_i32_0 : i32, i32
  }
  func.func @transform_4(%arg0: i32) -> (i32, i32) {
    %c0_i32 = arith.constant 0 : i32
    %c0_i32_0 = arith.constant 0 : i32
    %c0_i32_1 = arith.constant 0 : i32
    return %c0_i32, %c0_i32_0 : i32, i32
  }
  func.func @transform_5(%arg0: i32) -> (i32, i32) {
    %c0_i32 = arith.constant 0 : i32
    %c0_i32_0 = arith.constant 0 : i32
    %c0_i32_1 = arith.constant 0 : i32
    return %c0_i32, %c0_i32_0 : i32, i32
  }
  func.func @transform_6(%arg0: i32) -> (i32, i32) {
    %c0_i32 = arith.constant 0 : i32
    %c0_i32_0 = arith.constant 0 : i32
    %c0_i32_1 = arith.constant 0 : i32
    return %c0_i32, %c0_i32_0 : i32, i32
  }
  func.func @transform_7(%arg0: i32) -> (i32, i32) {
    %c0_i32 = arith.constant 0 : i32
    %c0_i32_0 = arith.constant 0 : i32
    return %arg0, %c0_i32 : i32, i32
  }
}

</mosaic_0001>

<llo_original>
// kernel: tpu_custom_call.1
$region0: #{tpu_custom_call.1}
  #allocation0 [shape = 'u32[]', space=smem, size = 0x4, offset = 0x4, fixed_abs, tag = 'smem constant byte address 0x4 - core index']
  #allocation1 [shape = 'u32[72,128]{1,0:T(1,128)}', space=vmem, size = 0x9000, scoped, tag = 'internal scratch']
  %s0 = inlined_call_operand.hbm [shape: f32[8,32], index: 0, kind: input, shape index: {}]
  %s1 = inlined_call_operand.hbm [shape: f32[32,64], index: 1, kind: input, shape index: {}]
  %s2 = inlined_call_operand.vmem [shape: f32[1,64], index: 2, kind: input, shape index: {}]
  %s3 = inlined_call_operand.hbm [shape: f32[64,128], index: 3, kind: input, shape index: {}]
  %s4 = inlined_call_operand.hbm [shape: f32[1,128], index: 4, kind: input, shape index: {}]
  %s5 = inlined_call_operand.hbm [shape: f32[128,256], index: 5, kind: input, shape index: {}]
  %s6 = inlined_call_operand.vmem [shape: f32[1,256], index: 6, kind: input, shape index: {}]
  %s7 = inlined_call_operand.hbm [shape: f32[8,256], index: 7, kind: output, shape index: {}]
  %s8 = sld [smem:[#allocation0]]
  $region58: #{tpu_custom_call.1} parent=0
    _
  %s10 = ssub.s32 1, %s8
  %s11 = scalar_select 0, %s10, %s8
  $region1: #{tpu_custom_call.1} parent=0
    #allocation2 [shape = 'u8[4096]{0}', space=vmem, size = 0x1000, scoped, tag = 'input window, operand 0, single buffered']
    #allocation3 [shape = 's32[1]{0}', space=sflag, size = 0x4, scoped, tag = 'scoped memory for tpu_custom_call.1']
    #allocation4 [shape = 's32[1]{0}', space=sflag, size = 0x4, scoped, tag = 'scoped memory for tpu_custom_call.1']
    #allocation5 [shape = 'u8[16384]{0}', space=vmem, size = 0x4000, scoped, tag = 'input window, operand 1, single buffered']
    #allocation6 [shape = 's32[1]{0}', space=sflag, size = 0x4, scoped, tag = 'scoped memory for tpu_custom_call.1']
    #allocation7 [shape = 'u8[32768]{0}', space=vmem, size = 0x8000, scoped, tag = 'input window, operand 3, single buffered']
    #allocation8 [shape = 'u8[512]{0}', space=vmem, size = 0x400, scoped, tag = 'input window, operand 4, single buffered']
    #allocation9 [shape = 's32[1]{0}', space=sflag, size = 0x4, scoped, tag = 'scoped memory for tpu_custom_call.1']
    #allocation10 [shape = 'u8[131072]{0}', space=vmem, size = 0x20000, scoped, tag = 'input window, operand 5, single buffered']
    #allocation11 [shape = 'u8[8192]{0}', space=vmem, size = 0x2000, scoped, tag = 'output window, operand 0, single buffered']
    %12 = vsyncpa [#allocation3], 0
    %13 = vsyncpa [#allocation6], 0
    %14 = vsyncpa [#allocation9], 0
    %15 = vsyncpa [#allocation4], 0
    // Predicated region
    $region2: #{tpu_custom_call.1} parent=1 // pred_check
      _
    $region3: #{tpu_custom_call.1} parent=1 // pred_check_branch
      %17 = sbr.rel (0) target = $region5
    $region4: #{tpu_custom_call.1} parent=1 // pred_region
      %19 = vsyncadd [#allocation3], 0
      %s21 = sshll.u32 %s0, 4
      %s22 = int_to_ptr.hbm [resolvable:$true] %s21
      %s23 = sshll.u32 [#allocation2], 4
      %s24 = int_to_ptr.vmem [resolvable:$true] %s23
      %26 = dma.hbm_to_vmem [thread:$0]  %s22, 128, %s24, [#allocation3]
    $region5: #{tpu_custom_call.1} parent=1 // pred_fallthru
      _
    // Predicated region
    $region6: #{tpu_custom_call.1} parent=1 // pred_check
      _
    $region7: #{tpu_custom_call.1} parent=1 // pred_check_branch
      %28 = sbr.rel (0) target = $region9
    $region8: #{tpu_custom_call.1} parent=1 // pred_region
      %30 = vsyncadd [#allocation6], 0
      %s31 = sshll.u32 %s1, 4
      %s32 = int_to_ptr.hbm [resolvable:$true] %s31
      %s33 = sshll.u32 [#allocation5], 4
      %s34 = int_to_ptr.vmem [resolvable:$true] %s33
      %39 = dma.hbm_to_vmem [thread:$0]  %s32, 512, %s34, [#allocation6], 128, 128, 8
    $region9: #{tpu_custom_call.1} parent=1 // pred_fallthru
      _
    // Predicated region
    $region10: #{tpu_custom_call.1} parent=1 // pred_check
      _
    $region11: #{tpu_custom_call.1} parent=1 // pred_check_branch
      %41 = sbr.rel (0) target = $region13
    $region12: #{tpu_custom_call.1} parent=1 // pred_region
      _
    $region13: #{tpu_custom_call.1} parent=1 // pred_fallthru
      _
    // Predicated region
    $region14: #{tpu_custom_call.1} parent=1 // pred_check
      _
    $region15: #{tpu_custom_call.1} parent=1 // pred_check_branch
      %43 = sbr.rel (0) target = $region17
    $region16: #{tpu_custom_call.1} parent=1 // pred_region
      %45 = vsyncadd [#allocation6], 0
      %s46 = sshll.u32 %s3, 4
      %s47 = int_to_ptr.hbm [resolvable:$true] %s46
      %s48 = sshll.u32 [#allocation7], 4
      %s49 = int_to_ptr.vmem [resolvable:$true] %s48
      %54 = dma.hbm_to_vmem [thread:$0]  %s47, 1024, %s49, [#allocation6], 128, 128, 8
    $region17: #{tpu_custom_call.1} parent=1 // pred_fallthru
      _
    // Predicated region
    $region18: #{tpu_custom_call.1} parent=1 // pred_check
      _
    $region19: #{tpu_custom_call.1} parent=1 // pred_check_branch
      %56 = sbr.rel (0) target = $region21
    $region20: #{tpu_custom_call.1} parent=1 // pred_region
      %58 = vsyncadd [#allocation9], 0
      %s60 = sshll.u32 %s4, 4
      %s61 = int_to_ptr.hbm [resolvable:$true] %s60
      %s62 = sshll.u32 [#allocation8], 4
      %s63 = int_to_ptr.vmem [resolvable:$true] %s62
      %65 = dma.hbm_to_vmem [thread:$0]  %s61, 16, %s63, [#allocation9]
    $region21: #{tpu_custom_call.1} parent=1 // pred_fallthru
      _
    // Predicated region
    $region22: #{tpu_custom_call.1} parent=1 // pred_check
      _
    $region23: #{tpu_custom_call.1} parent=1 // pred_check_branch
      %67 = sbr.rel (0) target = $region25
    $region24: #{tpu_custom_call.1} parent=1 // pred_region
      %69 = vsyncadd [#allocation9], 0
      %s70 = sshll.u32 %s5, 4
      %s71 = int_to_ptr.hbm [resolvable:$true] %s70
      %s72 = sshll.u32 [#allocation10], 4
      %s73 = int_to_ptr.vmem [resolvable:$true] %s72
      %78 = dma.hbm_to_vmem [thread:$0]  %s71, 4096, %s73, [#allocation9], 256, 256, 16
    $region25: #{tpu_custom_call.1} parent=1 // pred_fallthru
      _
    // Predicated region
    $region26: #{tpu_custom_call.1} parent=1 // pred_check
      _
    $region27: #{tpu_custom_call.1} parent=1 // pred_check_branch
      %80 = sbr.rel (0) target = $region29
    $region28: #{tpu_custom_call.1} parent=1 // pred_region
      _
    $region29: #{tpu_custom_call.1} parent=1 // pred_fallthru
      _
    // Predicated region
    $region30: #{tpu_custom_call.1} parent=1 // pred_check
      _
    $region31: #{tpu_custom_call.1} parent=1 // pred_check_branch
      %82 = sbr.rel (0) target = $region33
    $region32: #{tpu_custom_call.1} parent=1 // pred_region
      %84 = dma.done [#allocation3], 128
    $region33: #{tpu_custom_call.1} parent=1 // pred_fallthru
      _
    // Predicated region
    $region34: #{tpu_custom_call.1} parent=1 // pred_check
      _
    $region35: #{tpu_custom_call.1} parent=1 // pred_check_branch
      %86 = sbr.rel (0) target = $region37
    $region36: #{tpu_custom_call.1} parent=1 // pred_region
      %88 = dma.done [#allocation6], 512
    $region37: #{tpu_custom_call.1} parent=1 // pred_fallthru
      _
    // Predicated region
    $region38: #{tpu_custom_call.1} parent=1 // pred_check
      _
    $region39: #{tpu_custom_call.1} parent=1 // pred_check_branch
      %90 = sbr.rel (0) target = $region41
    $region40: #{tpu_custom_call.1} parent=1 // pred_region
      %92 = dma.done [#allocation6], 1024
    $region41: #{tpu_custom_call.1} parent=1 // pred_fallthru
      _
    // Predicated region
    $region42: #{tpu_custom_call.1} parent=1 // pred_check
      _
    $region43: #{tpu_custom_call.1} parent=1 // pred_check_branch
      %94 = sbr.rel (0) target = $region45
    $region44: #{tpu_custom_call.1} parent=1 // pred_region
      %96 = dma.done [#allocation9], 16
    $region45: #{tpu_custom_call.1} parent=1 // pred_fallthru
      _
    // Predicated region
    $region46: #{tpu_custom_call.1} parent=1 // pred_check
      _
    $region47: #{tpu_custom_call.1} parent=1 // pred_check_branch
      %98 = sbr.rel (0) target = $region49
    $region48: #{tpu_custom_call.1} parent=1 // pred_region
      %100 = dma.done [#allocation9], 4096
    $region49: #{tpu_custom_call.1} parent=1 // pred_fallthru
      _
    %v101 = vld [vmem:[#allocation2] sm:$0xff]
    %v102 = vld [vmem:[#allocation5] sm:$0xff]
    %v103 = vld [vmem:[#allocation5 + $0x8] sm:$0xff]
    %v104 = vld [vmem:[#allocation5 + $0x10] sm:$0xff]
    %v105 = vld [vmem:[#allocation5 + $0x18] sm:$0xff]
    %v106 = vld [vmem:[%s2] sm:$0x1]
    %v108 = vperm.slane %v106, 0
    %vm110 = vcmask 261120
    %v112 = vsel %vm110, %v101, 0
    %114 = vmatpush.msra.mxu0 0.0
    %115 = vmatpush.msra.mxu0 0.0
    %116 = vmatpush.msra.mxu0 0.0
    %117 = vmatpush.msra.mxu0 0.0
    %118 = vmatpush.msra.mxu0 0.0
    %119 = vmatpush.msra.mxu0 0.0
    %120 = vmatpush.msra.mxu0 0.0
    %121 = vmatpush.msra.mxu0 0.0
    %122 = vmatpush.msra.mxu0 0.0
    %123 = vmatpush.msra.mxu0 0.0
    %124 = vmatpush.msra.mxu0 0.0
    %125 = vmatpush.msra.mxu0 0.0
    %126 = vmatpush.msra.mxu0 %v105
    %127 = vmatpush.msra.mxu0 %v104
    %128 = vmatpush.msra.mxu0 %v103
    %129 = vmatpush.msra.mxu0 %v102
    %130 = vmatmul.f32.gmra.mxu0 %v112
    %v131 = vpop.f32.mrf.mxu0
    %v132 = vadd.f32 %v108, %v131
    %133 = vdwg.mxu0
    %v134 = vmax.f32 %v132, 0.0
    %v135 = vld [vmem:[#allocation7] sm:$0xff]
    %v136 = vld [vmem:[#allocation7 + $0x8] sm:$0xff]
    %v137 = vld [vmem:[#allocation7 + $0x10] sm:$0xff]
    %v138 = vld [vmem:[#allocation7 + $0x18] sm:$0xff]
    %v139 = vld [vmem:[#allocation7 + $0x20] sm:$0xff]
    %v140 = vld [vmem:[#allocation7 + $0x28] sm:$0xff]
    %v141 = vld [vmem:[#allocation7 + $0x30] sm:$0xff]
    %v142 = vld [vmem:[#allocation7 + $0x38] sm:$0xff]
    %v143 = vld [vmem:[#allocation8] sm:$0x1]
    %v145 = vperm.slane %v143, 0
    %vm147 = vcmask 523264
    %v149 = vsel %vm147, %v134, 0
    %151 = vmatpush.msra.mxu0 0.0
    %152 = vmatpush.msra.mxu0 0.0
    %153 = vmatpush.msra.mxu0 0.0
    %154 = vmatpush.msra.mxu0 0.0
    %155 = vmatpush.msra.mxu0 0.0
    %156 = vmatpush.msra.mxu0 0.0
    %157 = vmatpush.msra.mxu0 0.0
    %158 = vmatpush.msra.mxu0 0.0
    %159 = vmatpush.msra.mxu0 %v142
    %160 = vmatpush.msra.mxu0 %v141
    %161 = vmatpush.msra.mxu0 %v140
    %162 = vmatpush.msra.mxu0 %v139
    %163 = vmatpush.msra.mxu0 %v138
    %164 = vmatpush.msra.mxu0 %v137
    %165 = vmatpush.msra.mxu0 %v136
    %166 = vmatpush.msra.mxu0 %v135
    %167 = vmatmul.f32.gmra.mxu0 %v149
    %v168 = vpop.f32.mrf.mxu0
    %v169 = vadd.f32 %v145, %v168
    %170 = vdwg.mxu0
    %v171 = vmax.f32 %v169, 0.0
    %v172 = vld [vmem:[#allocation10] sm:$0xff]
    %v173 = vld [vmem:[#allocation10 + $0x8] sm:$0xff]
    %v174 = vld [vmem:[#allocation10 + $0x10] sm:$0xff]
    %v175 = vld [vmem:[#allocation10 + $0x18] sm:$0xff]
    %v176 = vld [vmem:[#allocation10 + $0x20] sm:$0xff]
    %v177 = vld [vmem:[#allocation10 + $0x28] sm:$0xff]
    %v178 = vld [vmem:[#allocation10 + $0x30] sm:$0xff]
    %v179 = vld [vmem:[#allocation10 + $0x38] sm:$0xff]
    %v180 = vld [vmem:[#allocation10 + $0x40] sm:$0xff]
    %v181 = vld [vmem:[#allocation10 + $0x48] sm:$0xff]
    %v182 = vld [vmem:[#allocation10 + $0x50] sm:$0xff]
    %v183 = vld [vmem:[#allocation10 + $0x58] sm:$0xff]
    %v184 = vld [vmem:[#allocation10 + $0x60] sm:$0xff]
    %v185 = vld [vmem:[#allocation10 + $0x68] sm:$0xff]
    %v186 = vld [vmem:[#allocation10 + $0x70] sm:$0xff]
    %v187 = vld [vmem:[#allocation10 + $0x78] sm:$0xff]
    %v188 = vld [vmem:[#allocation10 + $0x80] sm:$0xff]
    %v189 = vld [vmem:[#allocation10 + $0x88] sm:$0xff]
    %v190 = vld [vmem:[#allocation10 + $0x90] sm:$0xff]
    %v191 = vld [vmem:[#allocation10 + $0x98] sm:$0xff]
    %v192 = vld [vmem:[#allocation10 + $0xa0] sm:$0xff]
    %v193 = vld [vmem:[#allocation10 + $0xa8] sm:$0xff]
    %v194 = vld [vmem:[#allocation10 + $0xb0] sm:$0xff]
    %v195 = vld [vmem:[#allocation10 + $0xb8] sm:$0xff]
    %v196 = vld [vmem:[#allocation10 + $0xc0] sm:$0xff]
    %v197 = vld [vmem:[#allocation10 + $0xc8] sm:$0xff]
    %v198 = vld [vmem:[#allocation10 + $0xd0] sm:$0xff]
    %v199 = vld [vmem:[#allocation10 + $0xd8] sm:$0xff]
    %v200 = vld [vmem:[#allocation10 + $0xe0] sm:$0xff]
    %v201 = vld [vmem:[#allocation10 + $0xe8] sm:$0xff]
    %v202 = vld [vmem:[#allocation10 + $0xf0] sm:$0xff]
    %v203 = vld [vmem:[#allocation10 + $0xf8] sm:$0xff]
    %v204 = vld [vmem:[%s6] sm:$0x3]
    %v206 = vperm.slane %v204, 0
    %v207 = vperm.slane %v204, 1
    %210 = vmatpush.msra.mxu0 %v202
    %211 = vmatpush.msra.mxu0 %v200
    %212 = vmatpush.msra.mxu0 %v198
    %213 = vmatpush.msra.mxu0 %v196
    %214 = vmatpush.msra.mxu0 %v194
    %215 = vmatpush.msra.mxu0 %v192
    %216 = vmatpush.msra.mxu0 %v190
    %217 = vmatpush.msra.mxu0 %v188
    %218 = vmatpush.msra.mxu0 %v186
    %219 = vmatpush.msra.mxu0 %v184
    %220 = vmatpush.msra.mxu0 %v182
    %221 = vmatpush.msra.mxu0 %v180
    %222 = vmatpush.msra.mxu0 %v178
    %223 = vmatpush.msra.mxu0 %v176
    %224 = vmatpush.msra.mxu0 %v174
    %225 = vmatpush.msra.mxu0 %v172
    %226 = vmatmul.f32.gmra.mxu0 %v171
    %v227 = vpop.f32.mrf.mxu0
    %v228 = vadd.f32 %v206, %v227
    %229 = vdwg.mxu0
    %230 = vmatpush.msra.mxu0 %v203
    %231 = vmatpush.msra.mxu0 %v201
    %232 = vmatpush.msra.mxu0 %v199
    %233 = vmatpush.msra.mxu0 %v197
    %234 = vmatpush.msra.mxu0 %v195
    %235 = vmatpush.msra.mxu0 %v193
    %236 = vmatpush.msra.mxu0 %v191
    %237 = vmatpush.msra.mxu0 %v189
    %238 = vmatpush.msra.mxu0 %v187
    %239 = vmatpush.msra.mxu0 %v185
    %240 = vmatpush.msra.mxu0 %v183
    %241 = vmatpush.msra.mxu0 %v181
    %242 = vmatpush.msra.mxu0 %v179
    %243 = vmatpush.msra.mxu0 %v177
    %244 = vmatpush.msra.mxu0 %v175
    %245 = vmatpush.msra.mxu0 %v173
    %246 = vmatmul.f32.gmra.mxu0 %v171
    %v247 = vpop.f32.mrf.mxu0
    %v248 = vadd.f32 %v207, %v247
    %249 = vdwg.mxu0
    %v250 = vtanh.pop %v228
    %v251 = vtanh.pop %v248
    %252 = vst [vmem:[#allocation11] sm:$0xff] %v250
    %253 = vst [vmem:[#allocation11 + $0x8] sm:$0xff] %v251
    // Predicated region
    $region50: #{tpu_custom_call.1} parent=1 // pred_check
      _
    $region51: #{tpu_custom_call.1} parent=1 // pred_check_branch
      %255 = sbr.rel (0) target = $region53
    $region52: #{tpu_custom_call.1} parent=1 // pred_region
      %257 = vsyncadd [#allocation4], 0
      %s259 = sshll.u32 [#allocation11], 4
      %s260 = int_to_ptr.vmem [resolvable:$true] %s259
      %s261 = sshll.u32 %s7, 4
      %s262 = int_to_ptr.hbm [resolvable:$true] %s261
      %264 = dma.vmem_to_hbm [thread:$0]  %s260, 256, %s262, [#allocation4]
    $region53: #{tpu_custom_call.1} parent=1 // pred_fallthru
      _
    // Predicated region
    $region54: #{tpu_custom_call.1} parent=1 // pred_check
      _
    $region55: #{tpu_custom_call.1} parent=1 // pred_check_branch
      %266 = sbr.rel (0) target = $region57
    $region56: #{tpu_custom_call.1} parent=1 // pred_region
      %268 = dma.done [#allocation4], 256
    $region57: #{tpu_custom_call.1} parent=1 // pred_fallthru
      _
    %269 = vsyncpa [#allocation3], 1
    %270 = vsyncpa [#allocation6], 1
    %271 = vsyncpa [#allocation9], 1
    %272 = vsyncpa [#allocation4], 1

</llo_original>
